<compile_context>
chip_gen: v6e
topology: v6e:2x2x1
jax: 0.10.0
libtpu: 0.0.40
codegen_flags: <defaults>
</compile_context>

<pallas_src>
import functools

import jax
import jax.numpy as jnp
from jax.experimental import pallas as pl
from jax.experimental.pallas import tpu as pltpu


# ---------------------------------------------------------------------------
# Hardware / VMEM budgeting helpers
# ---------------------------------------------------------------------------

_DEFAULT_VMEM_CAP = 64 * 1024 * 1024   # v7x per-TC VMEM (most conservative)


def _vmem_capacity_bytes():
    try:
        return int(pltpu.get_tpu_info().vmem_capacity_bytes)
    except Exception:
        return _DEFAULT_VMEM_CAP


def _pick_block_batch(batch, per_batch_bytes, budget_bytes):
    """Largest divisor of `batch` whose (double-buffer accounted) tile fits the
    per-step VMEM budget.  No forced grid split: v5e/v6e have a single
    TensorCore (the grid is a serial loop), so fewer / bigger steps means less
    per-step overhead and lane-denser output blocks."""
    limit = max(1, int(budget_bytes) // max(int(per_batch_bytes), 1))
    limit = min(limit, batch)
    for d in range(limit, 0, -1):
        if batch % d == 0:
            return d
    return 1


# ---------------------------------------------------------------------------
# Pallas kernel 1: batched ScaledDotProductAttention core
# ---------------------------------------------------------------------------

def _attention_block(q, k, v, *, inv_scale):
    # q: (TB, n_q, d_k), k: (TB, n_k, d_k), v: (TB, n_k, d_v)
    # Batched contraction over last dims — no k.T / no XLU transpose.
    u = jnp.einsum("bqd,bkd->bqk", q, k,
                   preferred_element_type=jnp.float32) * inv_scale
    # Softmax over the *query* axis (torch softmax(dim=1)), kept in f32.
    m = jnp.max(u, axis=1, keepdims=True)
    e = jnp.exp(u - m)
    denom = jnp.sum(e, axis=1, keepdims=True)
    attn = e * pl.reciprocal(denom, approx=True)          # EUP, no vector divide
    out = jnp.einsum("bqk,bkv->bqv", attn.astype(v.dtype), v,
                     preferred_element_type=jnp.float32)
    return attn, out


def _store_lane_packed(ref, val):
    # val: (TB, n_q, f) -> ref[0]: (n_q, TB*f) lane-packed slab via unrolled
    # sub-stores at static lane offsets (no in-kernel concat, no intermediate).
    tb, _, f = val.shape
    for b in range(tb):
        ref[0, :, b * f:(b + 1) * f] = val[b].astype(ref.dtype)


def _sdpa_kernel_out_only(q_ref, k_ref, v_ref, out_ref, *, inv_scale):
    _, out = _attention_block(q_ref[...], k_ref[...], v_ref[...],
                              inv_scale=inv_scale)
    _store_lane_packed(out_ref, out)


def _sdpa_kernel_with_attn(q_ref, k_ref, v_ref, attn_ref, out_ref, *, inv_scale):
    attn, out = _attention_block(q_ref[...], k_ref[...], v_ref[...],
                                 inv_scale=inv_scale)
    _store_lane_packed(attn_ref, attn)
    _store_lane_packed(out_ref, out)


def _unpack_lanes(x, batch, tb, rows, feat):
    # (batch//tb, rows, tb*feat) -> (batch, rows, feat)   (cheap XLA reshape)
    gb = x.shape[0]
    x = x.reshape(gb, rows, tb, feat)
    x = jnp.transpose(x, (0, 2, 1, 3))
    return x.reshape(batch, rows, feat)


def scaled_dot_product_attention(q, k, v, scale, *, return_attn=True):
    """Pallas port of ScaledDotProductAttention.forward (mask=None).

    q: (B, n_q, d_k), k: (B, n_k, d_k), v: (B, n_k, d_v).
    Returns (attn, out) if return_attn else out.  softmax is over torch dim=1
    (the query axis), exactly as in the reference module.
    """
    B, n_q, d_k = q.shape
    Bk, n_k, d_k2 = k.shape
    Bv, n_v, d_v = v.shape
    assert B == Bk == Bv and d_k == d_k2 and n_k == n_v

    inv_scale = 1.0 / float(scale)
    out_dtype = q.dtype
    itemsize = jnp.dtype(q.dtype).itemsize

    # Per-batch-element VMEM footprint, including BlockSpec double-buffering
    # (x2 on every input/output tile) and the f32 softmax intermediates.
    in_tile = (n_q * d_k + n_k * d_k + n_k * d_v) * itemsize
    out_tile = n_q * d_v * itemsize
    attn_tile = n_q * n_k * itemsize if return_attn else 0
    f32_tmp = (2 * n_q * n_k + n_q * d_v) * 4
    per_batch = 2 * (in_tile + out_tile + attn_tile) + f32_tmp

    vmem_cap = _vmem_capacity_bytes()
    budget = min(16 * 1024 * 1024, vmem_cap // 6)
    tb = _pick_block_batch(B, per_batch, budget)
    grid_b = B // tb

    # Only raise the scoped-VMEM limit when the derived working set needs it.
    need = tb * per_batch + (2 << 20)
    vmem_limit = None
    if need > 16 * 1024 * 1024:
        vmem_limit = int(min(need * 3 // 2, vmem_cap * 3 // 4))

    in_specs = [
        pl.BlockSpec((tb, n_q, d_k), lambda b: (b, 0, 0)),
        pl.BlockSpec((tb, n_k, d_k), lambda b: (b, 0, 0)),
        pl.BlockSpec((tb, n_k, d_v), lambda b: (b, 0, 0)),
    ]
    out_spec = pl.BlockSpec((1, n_q, tb * d_v), lambda b: (b, 0, 0))
    out_struct = jax.ShapeDtypeStruct((grid_b, n_q, tb * d_v), out_dtype)

    compiler_params = pltpu.CompilerParams(
        dimension_semantics=("parallel",),
        vmem_limit_bytes=vmem_limit,
    )

    if return_attn:
        kernel = functools.partial(_sdpa_kernel_with_attn, inv_scale=inv_scale)
        attn_spec = pl.BlockSpec((1, n_q, tb * n_k), lambda b: (b, 0, 0))
        attn_struct = jax.ShapeDtypeStruct((grid_b, n_q, tb * n_k), out_dtype)
        attn_p, out_p = pl.pallas_call(
            kernel,
            grid_spec=pltpu.PrefetchScalarGridSpec(
                num_scalar_prefetch=0,
                grid=(grid_b,),
                in_specs=in_specs,
                out_specs=(attn_spec, out_spec),
            ),
            out_shape=(attn_struct, out_struct),
            compiler_params=compiler_params,
        )(q, k, v)
        attn = _unpack_lanes(attn_p, B, tb, n_q, n_k)
        out = _unpack_lanes(out_p, B, tb, n_q, d_v)
        return attn, out

    kernel = functools.partial(_sdpa_kernel_out_only, inv_scale=inv_scale)
    out_p = pl.pallas_call(
        kernel,
        grid_spec=pltpu.PrefetchScalarGridSpec(
            num_scalar_prefetch=0,
            grid=(grid_b,),
            in_specs=in_specs,
            out_specs=out_spec,
        ),
        out_shape=out_struct,
        compiler_params=compiler_params,
    )(q, k, v)
    return _unpack_lanes(out_p, B, tb, n_q, d_v)


# ---------------------------------------------------------------------------
# Pallas kernel 2: fused per-modality MHA core
#   (fc_q / fc_k / fc_v projections + per-head scaled-dot-product attention)
# ---------------------------------------------------------------------------

def _fused_mha_kernel(q_ref, k_ref, v_ref, wq_ref, bq_ref, wk_ref, bk_ref,
                      wv_ref, bv_ref, out_ref, *, n_head, d_k, d_v, inv_scale):
    qp = jnp.dot(q_ref[...], wq_ref[...],
                 preferred_element_type=jnp.float32) + bq_ref[...]
    kp = jnp.dot(k_ref[...], wk_ref[...],
                 preferred_element_type=jnp.float32) + bk_ref[...]
    vp = jnp.dot(v_ref[...], wv_ref[...],
                 preferred_element_type=jnp.float32) + bv_ref[...]
    for h in range(n_head):                       # statically unrolled (n_head small)
        qh = qp[:, h * d_k:(h + 1) * d_k]         # (n_q, d_k) static lane slice
        kh = kp[:, h * d_k:(h + 1) * d_k]         # (n_k, d_k)
        vh = vp[:, h * d_v:(h + 1) * d_v]         # (n_k, d_v)
        u = jnp.einsum("qd,kd->qk", qh, kh,
                       preferred_element_type=jnp.float32) * inv_scale
        m = jnp.max(u, axis=0, keepdims=True)     # torch softmax(dim=1) == query axis
        e = jnp.exp(u - m)
        denom = jnp.sum(e, axis=0, keepdims=True)
        attn = e * pl.reciprocal(denom, approx=True)
        out_ref[h] = jnp.dot(attn, vh,
                             preferred_element_type=jnp.float32).astype(out_ref.dtype)


def mha_core_pallas(q, k, v, p, *, n_head, d_k, d_v):
    """One pallas_call: fc_q/fc_k/fc_v + per-head attention.
    Returns (n_head, n_q, d_v) — the layout the torch raw-reshape quirk
    (.view(n_q, -1)) then consumes as a free row-major reshape."""
    n_q = q.shape[0]
    inv_scale = 1.0 / (float(d_k) ** 0.5)
    kernel = functools.partial(_fused_mha_kernel, n_head=n_head, d_k=d_k,
                               d_v=d_v, inv_scale=inv_scale)
    return pl.pallas_call(
        kernel,
        out_shape=jax.ShapeDtypeStruct((n_head, n_q, d_v), q.dtype),
    )(q, k, v,
      p["fc_q_w"], p["fc_q_b"].reshape(1, -1),
      p["fc_k_w"], p["fc_k_b"].reshape(1, -1),
      p["fc_v_w"], p["fc_v_b"].reshape(1, -1))


# ---------------------------------------------------------------------------
# Pure-JAX references (for correctness checks).
# ---------------------------------------------------------------------------

def _sdpa_reference(q, k, v, scale):
    u = jnp.einsum("bqd,bkd->bqk", q, k) / scale
    attn = jax.nn.softmax(u, axis=1)            # torch softmax(dim=1)
    out = jnp.einsum("bqk,bkv->bqv", attn, v)
    return attn, out


def mha_core_reference(q, k, v, p, *, n_head, d_k, d_v):
    n_q, n_k = q.shape[0], k.shape[0]
    qh = (q @ p["fc_q_w"] + p["fc_q_b"]).reshape(n_q, n_head, d_k).transpose(1, 0, 2)
    kh = (k @ p["fc_k_w"] + p["fc_k_b"]).reshape(n_k, n_head, d_k).transpose(1, 0, 2)
    vh = (v @ p["fc_v_w"] + p["fc_v_b"]).reshape(n_k, n_head, d_v).transpose(1, 0, 2)
    _, out = _sdpa_reference(qh, kh, vh, float(d_k) ** 0.5)
    return out                                   # (n_head, n_q, d_v)


# ---------------------------------------------------------------------------
# MultiHeadAttention / CrossModalMultiHeadAttention forward (plain JAX around
# the Pallas MHA core; fc_o / layernorm / fc are single tiny GEMMs).
# ---------------------------------------------------------------------------

def _layer_norm(x, gamma, beta, eps=1e-5):
    mu = jnp.mean(x, axis=-1, keepdims=True)
    var = jnp.mean((x - mu) ** 2, axis=-1, keepdims=True)
    return (x - mu) * jax.lax.rsqrt(var + eps) * gamma + beta


def multi_head_attention_forward(p, q, k, v, *, n_head, d_k, d_v, core_fn):
    n_q = q.shape[0]
    out3 = core_fn(q, k, v, p, n_head=n_head, d_k=d_k, d_v=d_v)   # (n_head, n_q, d_v)
    # Reference: .view(n_head, n_q, d_v).permute(0, 1, 2).contiguous().view(n_q, -1)
    # permute(0,1,2) is the identity -> a plain row-major reshape (kept verbatim;
    # this quirk mixes query rows, which is why fc_o is NOT fused into the kernel).
    out = out3.reshape(n_q, n_head * d_v)
    return out @ p["fc_o_w"] + p["fc_o_b"]


def cross_modal_mha_forward(params, modal_features, *, n_heads, d_k, d_v, core_fn):
    # TODO(synk): optional `mask` (masked_fill -inf) path not wired up (mask=None).
    q0 = modal_features[0] @ params["wq_w"] + params["wq_b"]
    attended = []
    for feat_j in modal_features:
        kj = feat_j @ params["wk_w"] + params["wk_b"]
        vj = feat_j @ params["wv_w"] + params["wv_b"]
        mha_out = multi_head_attention_forward(
            params["mha"], q0, kj, vj,
            n_head=n_heads, d_k=d_k, d_v=d_v, core_fn=core_fn)
        cat = jnp.concatenate([feat_j, mha_out], axis=1)     # (n, d_model + d_o) == (n, 200)
        ln = _layer_norm(cat, params["ln_gamma"], params["ln_beta"])
        attended.append(ln @ params["fc_w"] + params["fc_b"])  # (n, 100)
    return attended


def _init_params(key, *, n_heads, d_k, d_v, d_model, d_o):
    assert d_model + d_o == 200, "LayerNorm(200)/fc(200,100) require d_model + d_o == 200"
    ks = jax.random.split(key, 8)

    def w(kk, shape, s=0.08):
        return jax.random.normal(kk, shape, dtype=jnp.float32) * s

    return {
        "wq_w": w(ks[0], (d_model, d_k)), "wq_b": jnp.zeros((d_k,), jnp.float32),
        "wk_w": w(ks[1], (d_model, d_k)), "wk_b": jnp.zeros((d_k,), jnp.float32),
        "wv_w": w(ks[2], (d_model, d_v)), "wv_b": jnp.zeros((d_v,), jnp.float32),
        "mha": {
            "fc_q_w": w(ks[3], (d_k, n_heads * d_k)),
            "fc_q_b": jnp.zeros((n_heads * d_k,), jnp.float32),
            "fc_k_w": w(ks[4], (d_k, n_heads * d_k)),
            "fc_k_b": jnp.zeros((n_heads * d_k,), jnp.float32),
            "fc_v_w": w(ks[5], (d_v, n_heads * d_v)),
            "fc_v_b": jnp.zeros((n_heads * d_v,), jnp.float32),
            "fc_o_w": w(ks[6], (n_heads * d_v, d_o)),
            "fc_o_b": jnp.zeros((d_o,), jnp.float32),
        },
        "ln_gamma": jnp.ones((d_model + d_o,), jnp.float32),
        "ln_beta": jnp.zeros((d_model + d_o,), jnp.float32),
        "fc_w": w(ks[7], (d_model + d_o, 100)), "fc_b": jnp.zeros((100,), jnp.float32),
    }


if __name__ == "__main__":
    key = jax.random.PRNGKey(0)
    n_heads, d_k, d_v = 2, 32, 32
    d_model, d_o = 136, 64            # d_model + d_o == 200 (LayerNorm(200), fc(200,100))
    n_tokens, n_modalities = 8, 3

    k_params, k_feats, k_qkv = jax.random.split(key, 3)
    params = _init_params(k_params, n_heads=n_heads, d_k=d_k, d_v=d_v,
                          d_model=d_model, d_o=d_o)
    feat_keys = jax.random.split(k_feats, n_modalities)
    modal_features = [jax.random.normal(fk, (n_tokens, d_model), dtype=jnp.float32)
                      for fk in feat_keys]

    # --- 1) Standalone ScaledDotProductAttention kernel check (returns (attn, out)) ---
    kq, kk, kv = jax.random.split(k_qkv, 3)
    scale = float(d_k) ** 0.5
    qh = jax.random.normal(kq, (n_heads, n_tokens, d_k), dtype=jnp.float32)
    kh = jax.random.normal(kk, (n_heads, n_tokens, d_k), dtype=jnp.float32)
    vh = jax.random.normal(kv, (n_heads, n_tokens, d_v), dtype=jnp.float32)

    attn_pl, out_pl = scaled_dot_product_attention(qh, kh, vh, scale, return_attn=True)
    jax.block_until_ready((attn_pl, out_pl))
    attn_rf, out_rf = _sdpa_reference(qh, kh, vh, scale)
    assert jnp.allclose(attn_pl, attn_rf, atol=3e-3, rtol=3e-3), "attn mismatch"
    assert jnp.allclose(out_pl, out_rf, atol=3e-3, rtol=3e-3), "sdpa output mismatch"

    # bf16 smoke test (dtype robustness only; the production tiny-shape path stays f32).
    out_bf16 = scaled_dot_product_attention(
        qh.astype(jnp.bfloat16), kh.astype(jnp.bfloat16), vh.astype(jnp.bfloat16),
        scale, return_attn=False)
    jax.block_until_ready(out_bf16)
    assert out_bf16.dtype == jnp.bfloat16
    assert bool(jnp.all(jnp.isfinite(out_bf16.astype(jnp.float32))))

    # --- 2) Full CrossModalMultiHeadAttention forward (fused fc_q/k/v + attention kernel) ---
    attended_pallas = cross_modal_mha_forward(
        params, modal_features, n_heads=n_heads, d_k=d_k, d_v=d_v,
        core_fn=mha_core_pallas)
    jax.block_until_ready(attended_pallas)

    attended_ref = cross_modal_mha_forward(
        params, modal_features, n_heads=n_heads, d_k=d_k, d_v=d_v,
        core_fn=mha_core_reference)
    for a, b in zip(attended_pallas, attended_ref):
        assert a.shape == (n_tokens, 100)
        assert jnp.allclose(a, b, atol=1e-2, rtol=1e-2), "cross-modal output mismatch"

    print("KERNEL_OK")
</pallas_src>

<mosaic_0001>
module attributes {stable_mosaic.version = 11 : i64} {
  func.func @_sdpa_kernel_with_attn(%arg0: i32, %arg1: memref<2x8x32xf32, #tpu.memory_space<vmem>>, %arg2: memref<2x8x32xf32, #tpu.memory_space<vmem>>, %arg3: memref<2x8x32xf32, #tpu.memory_space<vmem>>, %arg4: memref<1x8x16xf32, #tpu.memory_space<vmem>>, %arg5: memref<1x8x64xf32, #tpu.memory_space<vmem>>) attributes {dimension_semantics = [#tpu.dimension_semantics<parallel>], iteration_bounds = array<i64: 1>, scalar_prefetch = 0 : i64, scratch_operands = 0 : i64, tpu.core_type = #tpu.core_type<tc>, window_params = [{transform_indices = @transform_0, window_bounds = array<i64: 2, 8, 32>}, {transform_indices = @transform_1, window_bounds = array<i64: 2, 8, 32>}, {transform_indices = @transform_2, window_bounds = array<i64: 2, 8, 32>}, {transform_indices = @transform_3, window_bounds = array<i64: 1, 8, 16>}, {transform_indices = @transform_4, window_bounds = array<i64: 1, 8, 64>}]} {
    %c0 = arith.constant 0 : index
    %c0_0 = arith.constant 0 : index
    %c0_1 = arith.constant 0 : index
    %0 = vector.load %arg1[%c0, %c0_0, %c0_1] : memref<2x8x32xf32, #tpu.memory_space<vmem>>, vector<2x8x32xf32>
    %c0_2 = arith.constant 0 : index
    %c0_3 = arith.constant 0 : index
    %c0_4 = arith.constant 0 : index
    %1 = vector.load %arg2[%c0_2, %c0_3, %c0_4] : memref<2x8x32xf32, #tpu.memory_space<vmem>>, vector<2x8x32xf32>
    %c0_5 = arith.constant 0 : index
    %c0_6 = arith.constant 0 : index
    %c0_7 = arith.constant 0 : index
    %2 = vector.load %arg3[%c0_5, %c0_6, %c0_7] : memref<2x8x32xf32, #tpu.memory_space<vmem>>, vector<2x8x32xf32>
    "tpu.trace_start"() <{level = 10 : i32, message = "bqd,bkd->bqk"}> : () -> ()
    %cst = arith.constant dense<0.000000e+00> : vector<2x8x8xf32>
    %3 = tpu.matmul %0, %1, %cst {dimension_numbers = #tpu.dot_dimension_numbers<[2], [2], [1], [1], [0, 0, 0, 1, 1, 1], [0], [0]>} : vector<2x8x32xf32>, vector<2x8x32xf32>, vector<2x8x8xf32> -> vector<2x8x8xf32>
    "tpu.trace_stop"() : () -> ()
    %cst_8 = arith.constant 0.176776692 : f32
    %4 = vector.broadcast %cst_8 : f32 to vector<2x8x8xf32>
    %5 = arith.mulf %3, %4 : vector<2x8x8xf32>
    %cst_9 = arith.constant dense<0xFF800000> : vector<2x8xf32>
    %6 = vector.multi_reduction <maximumf>, %5, %cst_9 [1] : vector<2x8x8xf32> to vector<2x8xf32>
    %7 = vector.shape_cast %6 : vector<2x8xf32> to vector<2x1x8xf32>
    %8 = vector.broadcast %7 : vector<2x1x8xf32> to vector<2x8x8xf32>
    %9 = arith.subf %5, %8 : vector<2x8x8xf32>
    %10 = math.exp %9 : vector<2x8x8xf32>
    %cst_10 = arith.constant dense<0.000000e+00> : vector<2x8xf32>
    %11 = vector.multi_reduction <add>, %10, %cst_10 [1] : vector<2x8x8xf32> to vector<2x8xf32>
    %12 = vector.shape_cast %11 : vector<2x8xf32> to vector<2x1x8xf32>
    %13 = tpu.reciprocal %12 {approx = true} : vector<2x1x8xf32> -> vector<2x1x8xf32>
    %14 = vector.broadcast %13 : vector<2x1x8xf32> to vector<2x8x8xf32>
    %15 = arith.mulf %10, %14 : vector<2x8x8xf32>
    "tpu.trace_start"() <{level = 10 : i32, message = "bqk,bkv->bqv"}> : () -> ()
    %cst_11 = arith.constant dense<0.000000e+00> : vector<2x8x32xf32>
    %16 = tpu.matmul %15, %2, %cst_11 {dimension_numbers = #tpu.dot_dimension_numbers<[2], [1], [1], [2], [0, 0, 0, 1, 1, 2], [0], [0]>} : vector<2x8x8xf32>, vector<2x8x32xf32>, vector<2x8x32xf32> -> vector<2x8x32xf32>
    "tpu.trace_stop"() : () -> ()
    %17 = vector.extract_strided_slice %15 {offsets = [0, 0, 0], sizes = [1, 8, 8], strides = [1, 1, 1]} : vector<2x8x8xf32> to vector<1x8x8xf32>
    %18 = vector.shape_cast %17 : vector<1x8x8xf32> to vector<8x8xf32>
    %c0_12 = arith.constant 0 : index
    %c0_13 = arith.constant 0 : index
    %c0_14 = arith.constant 0 : index
    %19 = vector.load %arg4[%c0_12, %c0_13, %c0_14] : memref<1x8x16xf32, #tpu.memory_space<vmem>>, vector<1x8x8xf32>
    %20 = vector.shape_cast %19 : vector<1x8x8xf32> to vector<8x8xf32>
    %21 = vector.shape_cast %18 : vector<8x8xf32> to vector<1x8x8xf32>
    tpu.vector_store %arg4[%c0_12, %c0_13, %c0_14], %21 {strides = array<i32>} : memref<1x8x16xf32, #tpu.memory_space<vmem>>, vector<1x8x8xf32>,
    %22 = vector.extract_strided_slice %15 {offsets = [1, 0, 0], sizes = [1, 8, 8], strides = [1, 1, 1]} : vector<2x8x8xf32> to vector<1x8x8xf32>
    %23 = vector.shape_cast %22 : vector<1x8x8xf32> to vector<8x8xf32>
    %c0_15 = arith.constant 0 : index
    %c0_16 = arith.constant 0 : index
    %c8 = arith.constant 8 : index
    %24 = vector.load %arg4[%c0_15, %c0_16, %c8] : memref<1x8x16xf32, #tpu.memory_space<vmem>>, vector<1x8x8xf32>
    %25 = vector.shape_cast %24 : vector<1x8x8xf32> to vector<8x8xf32>
    %26 = vector.shape_cast %23 : vector<8x8xf32> to vector<1x8x8xf32>
    tpu.vector_store %arg4[%c0_15, %c0_16, %c8], %26 {strides = array<i32>} : memref<1x8x16xf32, #tpu.memory_space<vmem>>, vector<1x8x8xf32>,
    %27 = vector.extract_strided_slice %16 {offsets = [0, 0, 0], sizes = [1, 8, 32], strides = [1, 1, 1]} : vector<2x8x32xf32> to vector<1x8x32xf32>
    %28 = vector.shape_cast %27 : vector<1x8x32xf32> to vector<8x32xf32>
    %c0_17 = arith.constant 0 : index
    %c0_18 = arith.constant 0 : index
    %c0_19 = arith.constant 0 : index
    %29 = vector.load %arg5[%c0_17, %c0_18, %c0_19] : memref<1x8x64xf32, #tpu.memory_space<vmem>>, vector<1x8x32xf32>
    %30 = vector.shape_cast %29 : vector<1x8x32xf32> to vector<8x32xf32>
    %31 = vector.shape_cast %28 : vector<8x32xf32> to vector<1x8x32xf32>
    tpu.vector_store %arg5[%c0_17, %c0_18, %c0_19], %31 {strides = array<i32>} : memref<1x8x64xf32, #tpu.memory_space<vmem>>, vector<1x8x32xf32>,
    %32 = vector.extract_strided_slice %16 {offsets = [1, 0, 0], sizes = [1, 8, 32], strides = [1, 1, 1]} : vector<2x8x32xf32> to vector<1x8x32xf32>
    %33 = vector.shape_cast %32 : vector<1x8x32xf32> to vector<8x32xf32>
    %c0_20 = arith.constant 0 : index
    %c0_21 = arith.constant 0 : index
    %c32 = arith.constant 32 : index
    %34 = vector.load %arg5[%c0_20, %c0_21, %c32] : memref<1x8x64xf32, #tpu.memory_space<vmem>>, vector<1x8x32xf32>
    %35 = vector.shape_cast %34 : vector<1x8x32xf32> to vector<8x32xf32>
    %36 = vector.shape_cast %33 : vector<8x32xf32> to vector<1x8x32xf32>
    tpu.vector_store %arg5[%c0_20, %c0_21, %c32], %36 {strides = array<i32>} : memref<1x8x64xf32, #tpu.memory_space<vmem>>, vector<1x8x32xf32>,
    return
  }
  func.func @transform_0(%arg0: i32) -> (i32, i32, i32) {
    %c0_i32 = arith.constant 0 : i32
    %c0_i32_0 = arith.constant 0 : i32
    %c0_i32_1 = arith.constant 0 : i32
    return %arg0, %c0_i32, %c0_i32_0 : i32, i32, i32
  }
  func.func @transform_1(%arg0: i32) -> (i32, i32, i32) {
    %c0_i32 = arith.constant 0 : i32
    %c0_i32_0 = arith.constant 0 : i32
    %c0_i32_1 = arith.constant 0 : i32
    return %arg0, %c0_i32, %c0_i32_0 : i32, i32, i32
  }
  func.func @transform_2(%arg0: i32) -> (i32, i32, i32) {
    %c0_i32 = arith.constant 0 : i32
    %c0_i32_0 = arith.constant 0 : i32
    %c0_i32_1 = arith.constant 0 : i32
    return %arg0, %c0_i32, %c0_i32_0 : i32, i32, i32
  }
  func.func @transform_3(%arg0: i32) -> (i32, i32, i32) {
    %c0_i32 = arith.constant 0 : i32
    %c0_i32_0 = arith.constant 0 : i32
    %c0_i32_1 = arith.constant 0 : i32
    return %arg0, %c0_i32, %c0_i32_0 : i32, i32, i32
  }
  func.func @transform_4(%arg0: i32) -> (i32, i32, i32) {
    %c0_i32 = arith.constant 0 : i32
    %c0_i32_0 = arith.constant 0 : i32
    %c0_i32_1 = arith.constant 0 : i32
    return %arg0, %c0_i32, %c0_i32_0 : i32, i32, i32
  }
}

</mosaic_0001>

<llo_original>
// kernel: tpu_custom_call.1
$region0: #{tpu_custom_call.1}
  #allocation0 [shape = 'u32[]', space=smem, size = 0x4, offset = 0x4, fixed_abs, tag = 'smem constant byte address 0x4 - core index']
  #allocation1 [shape = 'u32[144,128]{1,0:T(1,128)}', space=vmem, size = 0x12000, scoped, tag = 'internal scratch']
  %s0 = inlined_call_operand.hbm [shape: f32[2,8,32], index: 0, kind: input, shape index: {}]
  %s1 = inlined_call_operand.hbm [shape: f32[2,8,32], index: 1, kind: input, shape index: {}]
  %s2 = inlined_call_operand.hbm [shape: f32[2,8,32], index: 2, kind: input, shape index: {}]
  %s3 = inlined_call_operand.hbm [shape: f32[1,8,16], index: 3, kind: output, shape index: {0}]
  %s4 = inlined_call_operand.hbm [shape: f32[1,8,64], index: 4, kind: output, shape index: {1}]
  %5 = xla_tuple %s3, %s4
  %s6 = sld [smem:[#allocation0]]
  $region42: #{tpu_custom_call.1} parent=0
    _
  %s8 = ssub.s32 1, %s6
  %s9 = scalar_select 0, %s8, %s6
  $region1: #{tpu_custom_call.1} parent=0
    #allocation2 [shape = 'u8[8192]{0}', space=vmem, size = 0x2000, scoped, tag = 'input window, operand 0, single buffered']
    #allocation3 [shape = 's32[1]{0}', space=sflag, size = 0x4, scoped, tag = 'scoped memory for tpu_custom_call.1']
    #allocation4 [shape = 's32[1]{0}', space=sflag, size = 0x4, scoped, tag = 'scoped memory for tpu_custom_call.1']
    #allocation5 [shape = 'u8[8192]{0}', space=vmem, size = 0x2000, scoped, tag = 'input window, operand 1, single buffered']
    #allocation6 [shape = 's32[1]{0}', space=sflag, size = 0x4, scoped, tag = 'scoped memory for tpu_custom_call.1']
    #allocation7 [shape = 'u8[8192]{0}', space=vmem, size = 0x2000, scoped, tag = 'input window, operand 2, single buffered']
    #allocation8 [shape = 'u8[4096]{0}', space=vmem, size = 0x1000, scoped, tag = 'output window, operand 0, single buffered']
    #allocation9 [shape = 'u8[4096]{0}', space=vmem, size = 0x1000, scoped, tag = 'output window, operand 1, single buffered']
    #allocation10 [shape = 's32[1]{0}', space=sflag, size = 0x4, scoped, tag = 'scoped memory for tpu_custom_call.1']
    %10 = vsyncpa [#allocation3], 0
    %11 = vsyncpa [#allocation6], 0
    %12 = vsyncpa [#allocation4], 0
    %13 = vsyncpa [#allocation10], 0
    // Predicated region
    $region2: #{tpu_custom_call.1} parent=1 // pred_check
      _
    $region3: #{tpu_custom_call.1} parent=1 // pred_check_branch
      %15 = sbr.rel (0) target = $region5
    $region4: #{tpu_custom_call.1} parent=1 // pred_region
      %s17 = ssub.s32 256, 256
      %18 = vsyncadd [#allocation3], %s17
      %s19 = sshll.u32 [#allocation2], 4
      %s20 = int_to_ptr.vmem [resolvable:$true] %s19
      %25 = dma.hbm_to_vmem [thread:$0]  %s0, 256, %s20, [#allocation3], 128, 128, 8
    $region5: #{tpu_custom_call.1} parent=1 // pred_fallthru
      _
    // Predicated region
    $region6: #{tpu_custom_call.1} parent=1 // pred_check
      _
    $region7: #{tpu_custom_call.1} parent=1 // pred_check_branch
      %27 = sbr.rel (0) target = $region9
    $region8: #{tpu_custom_call.1} parent=1 // pred_region
      %s29 = ssub.s32 256, 256
      %30 = vsyncadd [#allocation6], %s29
      %s31 = sshll.u32 [#allocation5], 4
      %s32 = int_to_ptr.vmem [resolvable:$true] %s31
      %37 = dma.hbm_to_vmem [thread:$0]  %s1, 256, %s32, [#allocation6], 128, 128, 8
    $region9: #{tpu_custom_call.1} parent=1 // pred_fallthru
      _
    // Predicated region
    $region10: #{tpu_custom_call.1} parent=1 // pred_check
      _
    $region11: #{tpu_custom_call.1} parent=1 // pred_check_branch
      %39 = sbr.rel (0) target = $region13
    $region12: #{tpu_custom_call.1} parent=1 // pred_region
      %s41 = ssub.s32 256, 256
      %42 = vsyncadd [#allocation6], %s41
      %s43 = sshll.u32 [#allocation7], 4
      %s44 = int_to_ptr.vmem [resolvable:$true] %s43
      %49 = dma.hbm_to_vmem [thread:$0]  %s2, 256, %s44, [#allocation6], 128, 128, 8
    $region13: #{tpu_custom_call.1} parent=1 // pred_fallthru
      _
    // Predicated region
    $region14: #{tpu_custom_call.1} parent=1 // pred_check
      _
    $region15: #{tpu_custom_call.1} parent=1 // pred_check_branch
      %51 = sbr.rel (0) target = $region17
    $region16: #{tpu_custom_call.1} parent=1 // pred_region
      %52 = dma.done [#allocation3], 256
    $region17: #{tpu_custom_call.1} parent=1 // pred_fallthru
      _
    // Predicated region
    $region18: #{tpu_custom_call.1} parent=1 // pred_check
      _
    $region19: #{tpu_custom_call.1} parent=1 // pred_check_branch
      %54 = sbr.rel (0) target = $region21
    $region20: #{tpu_custom_call.1} parent=1 // pred_region
      %55 = dma.done [#allocation6], 256
    $region21: #{tpu_custom_call.1} parent=1 // pred_fallthru
      _
    // Predicated region
    $region22: #{tpu_custom_call.1} parent=1 // pred_check
      _
    $region23: #{tpu_custom_call.1} parent=1 // pred_check_branch
      %57 = sbr.rel (0) target = $region25
    $region24: #{tpu_custom_call.1} parent=1 // pred_region
      %58 = dma.done [#allocation6], 256
    $region25: #{tpu_custom_call.1} parent=1 // pred_fallthru
      _
    %v59 = vld [vmem:[#allocation2] sm:$0xff]
    %v60 = vld [vmem:[#allocation2 + $0x8] sm:$0xff]
    %v61 = vld [vmem:[#allocation5] sm:$0xff]
    %v62 = vld [vmem:[#allocation5 + $0x8] sm:$0xff]
    %v63 = vld [vmem:[#allocation7] sm:$0xff]
    %v64 = vld [vmem:[#allocation7 + $0x8] sm:$0xff]
    %vm65 = vcmask 261120
    %v67 = vsel %vm65, %v59, 0
    %v70 = vsel %vm65, %v61, 0
    %72 = vmatprep.subr.mxu0 0.0
    %73 = vmatpush1.xpose.msra.mxu0 0.0
    %74 = vmatprep.subr.mxu0 0.0
    %75 = vmatpush1.xpose.msra.mxu0 0.0
    %76 = vmatprep.subr.mxu0 0.0
    %77 = vmatpush1.xpose.msra.mxu0 0.0
    %78 = vmatprep.subr.mxu0 0.0
    %79 = vmatpush1.xpose.msra.mxu0 0.0
    %80 = vmatprep.subr.mxu0 0.0
    %81 = vmatpush1.xpose.msra.mxu0 0.0
    %82 = vmatprep.subr.mxu0 0.0
    %83 = vmatpush1.xpose.msra.mxu0 0.0
    %84 = vmatprep.subr.mxu0 0.0
    %85 = vmatpush1.xpose.msra.mxu0 0.0
    %86 = vmatprep.subr.mxu0 0.0
    %87 = vmatpush1.xpose.msra.mxu0 0.0
    %88 = vmatprep.subr.mxu0 0.0
    %89 = vmatpush1.xpose.msra.mxu0 0.0
    %90 = vmatprep.subr.mxu0 0.0
    %91 = vmatpush1.xpose.msra.mxu0 0.0
    %92 = vmatprep.subr.mxu0 0.0
    %93 = vmatpush1.xpose.msra.mxu0 0.0
    %94 = vmatprep.subr.mxu0 0.0
    %95 = vmatpush1.xpose.msra.mxu0 0.0
    %96 = vmatprep.subr.mxu0 0.0
    %97 = vmatpush1.xpose.msra.mxu0 0.0
    %98 = vmatprep.subr.mxu0 0.0
    %99 = vmatpush1.xpose.msra.mxu0 0.0
    %100 = vmatprep.subr.mxu0 0.0
    %101 = vmatpush1.xpose.msra.mxu0 0.0
    %102 = vmatprep.subr.mxu0 0.0
    %103 = vmatpush1.xpose.msra.mxu0 %v70
    %104 = vmatprep.subr.mxu0 0.0
    %105 = vmatpush2.xpose.msra.mxu0 0.0
    %106 = vmatprep.subr.mxu0 0.0
    %107 = vmatpush2.xpose.msra.mxu0 0.0
    %108 = vmatprep.subr.mxu0 0.0
    %109 = vmatpush2.xpose.msra.mxu0 0.0
    %110 = vmatprep.subr.mxu0 0.0
    %111 = vmatpush2.xpose.msra.mxu0 0.0
    %112 = vmatprep.subr.mxu0 0.0
    %113 = vmatpush2.xpose.msra.mxu0 0.0
    %114 = vmatprep.subr.mxu0 0.0
    %115 = vmatpush2.xpose.msra.mxu0 0.0
    %116 = vmatprep.subr.mxu0 0.0
    %117 = vmatpush2.xpose.msra.mxu0 0.0
    %118 = vmatprep.subr.mxu0 0.0
    %119 = vmatpush2.xpose.msra.mxu0 0.0
    %120 = vmatprep.subr.mxu0 0.0
    %121 = vmatpush2.xpose.msra.mxu0 0.0
    %122 = vmatprep.subr.mxu0 0.0
    %123 = vmatpush2.xpose.msra.mxu0 0.0
    %124 = vmatprep.subr.mxu0 0.0
    %125 = vmatpush2.xpose.msra.mxu0 0.0
    %126 = vmatprep.subr.mxu0 0.0
    %127 = vmatpush2.xpose.msra.mxu0 0.0
    %128 = vmatprep.subr.mxu0 0.0
    %129 = vmatpush2.xpose.msra.mxu0 0.0
    %130 = vmatprep.subr.mxu0 0.0
    %131 = vmatpush2.xpose.msra.mxu0 0.0
    %132 = vmatprep.subr.mxu0 0.0
    %133 = vmatpush2.xpose.msra.mxu0 0.0
    %134 = vmatprep.subr.mxu0 0.0
    %135 = vmatpush2.xpose.msra.mxu0 0.0
    %136 = vmatprep.mubr.f32.mxu0 0.0
    %137 = vmatmul.mubr.f32.gmra.mxu0 %v67
    %v138 = vpop.f32.mrf.mxu0
    %v139 = vadd.f32 0.0, %v138
    %v140 = vpop.f32.mrf.mxu0
    %141 = vdwg.mxu0
    %v143 = vsel %vm65, %v60, 0
    %v146 = vsel %vm65, %v62, 0
    %148 = vmatprep.subr.mxu0 0.0
    %149 = vmatpush1.xpose.msra.mxu0 0.0
    %150 = vmatprep.subr.mxu0 0.0
    %151 = vmatpush1.xpose.msra.mxu0 0.0
    %152 = vmatprep.subr.mxu0 0.0
    %153 = vmatpush1.xpose.msra.mxu0 0.0
    %154 = vmatprep.subr.mxu0 0.0
    %155 = vmatpush1.xpose.msra.mxu0 0.0
    %156 = vmatprep.subr.mxu0 0.0
    %157 = vmatpush1.xpose.msra.mxu0 0.0
    %158 = vmatprep.subr.mxu0 0.0
    %159 = vmatpush1.xpose.msra.mxu0 0.0
    %160 = vmatprep.subr.mxu0 0.0
    %161 = vmatpush1.xpose.msra.mxu0 0.0
    %162 = vmatprep.subr.mxu0 0.0
    %163 = vmatpush1.xpose.msra.mxu0 0.0
    %164 = vmatprep.subr.mxu0 0.0
    %165 = vmatpush1.xpose.msra.mxu0 0.0
    %166 = vmatprep.subr.mxu0 0.0
    %167 = vmatpush1.xpose.msra.mxu0 0.0
    %168 = vmatprep.subr.mxu0 0.0
    %169 = vmatpush1.xpose.msra.mxu0 0.0
    %170 = vmatprep.subr.mxu0 0.0
    %171 = vmatpush1.xpose.msra.mxu0 0.0
    %172 = vmatprep.subr.mxu0 0.0
    %173 = vmatpush1.xpose.msra.mxu0 0.0
    %174 = vmatprep.subr.mxu0 0.0
    %175 = vmatpush1.xpose.msra.mxu0 0.0
    %176 = vmatprep.subr.mxu0 0.0
    %177 = vmatpush1.xpose.msra.mxu0 0.0
    %178 = vmatprep.subr.mxu0 0.0
    %179 = vmatpush1.xpose.msra.mxu0 %v146
    %180 = vmatprep.subr.mxu0 0.0
    %181 = vmatpush2.xpose.msra.mxu0 0.0
    %182 = vmatprep.subr.mxu0 0.0
    %183 = vmatpush2.xpose.msra.mxu0 0.0
    %184 = vmatprep.subr.mxu0 0.0
    %185 = vmatpush2.xpose.msra.mxu0 0.0
    %186 = vmatprep.subr.mxu0 0.0
    %187 = vmatpush2.xpose.msra.mxu0 0.0
    %188 = vmatprep.subr.mxu0 0.0
    %189 = vmatpush2.xpose.msra.mxu0 0.0
    %190 = vmatprep.subr.mxu0 0.0
    %191 = vmatpush2.xpose.msra.mxu0 0.0
    %192 = vmatprep.subr.mxu0 0.0
    %193 = vmatpush2.xpose.msra.mxu0 0.0
    %194 = vmatprep.subr.mxu0 0.0
    %195 = vmatpush2.xpose.msra.mxu0 0.0
    %196 = vmatprep.subr.mxu0 0.0
    %197 = vmatpush2.xpose.msra.mxu0 0.0
    %198 = vmatprep.subr.mxu0 0.0
    %199 = vmatpush2.xpose.msra.mxu0 0.0
    %200 = vmatprep.subr.mxu0 0.0
    %201 = vmatpush2.xpose.msra.mxu0 0.0
    %202 = vmatprep.subr.mxu0 0.0
    %203 = vmatpush2.xpose.msra.mxu0 0.0
    %204 = vmatprep.subr.mxu0 0.0
    %205 = vmatpush2.xpose.msra.mxu0 0.0
    %206 = vmatprep.subr.mxu0 0.0
    %207 = vmatpush2.xpose.msra.mxu0 0.0
    %208 = vmatprep.subr.mxu0 0.0
    %209 = vmatpush2.xpose.msra.mxu0 0.0
    %210 = vmatprep.subr.mxu0 0.0
    %211 = vmatpush2.xpose.msra.mxu0 0.0
    %212 = vmatprep.mubr.f32.mxu0 0.0
    %213 = vmatmul.mubr.f32.gmra.mxu0 %v143
    %v214 = vpop.f32.mrf.mxu0
    %v215 = vadd.f32 0.0, %v214
    %v216 = vpop.f32.mrf.mxu0
    %217 = vdwg.mxu0
    %v218 = vmul.f32 %v139, 0.17677669
    %v219 = vmul.f32 %v215, 0.17677669
    %vm220 = vcmask 64512
    %v221 = vsel %vm220, %v218, -inf
    %v222 = vrot.slane %v221, 4
    %v223 = vmax.f32 %v221, %v222
    %v224 = vrot.slane %v223, 2
    %v225 = vmax.f32 %v223, %v224
    %v226 = vrot.slane %v225, 1
    %v227 = vmax.f32 %v225, %v226
    %v228 = vsel %vm220, %v219, -inf
    %v229 = vrot.slane %v228, 4
    %v230 = vmax.f32 %v228, %v229
    %v231 = vrot.slane %v230, 2
    %v232 = vmax.f32 %v230, %v231
    %v233 = vrot.slane %v232, 1
    %v234 = vmax.f32 %v232, %v233
    %v235 = vsub.f32 %v218, %v227
    %v236 = vsub.f32 %v219, %v234
    %v237 = vmul.f32 %v235, 1.442695
    %v238 = vpow.pop %v237
    %v239 = vmul.f32 %v236, 1.442695
    %v240 = vpow.pop %v239
    %v241 = vsel %vm220, %v238, 0.0
    %v242 = vrot.slane %v241, 4
    %v243 = vadd.f32 %v241, %v242
    %v244 = vrot.slane %v243, 2
    %v245 = vadd.f32 %v243, %v244
    %v246 = vrot.slane %v245, 1
    %v247 = vadd.f32 %v245, %v246
    %v248 = vsel %vm220, %v240, 0.0
    %v249 = vrot.slane %v248, 4
    %v250 = vadd.f32 %v248, %v249
    %v251 = vrot.slane %v250, 2
    %v252 = vadd.f32 %v250, %v251
    %v253 = vrot.slane %v252, 1
    %v254 = vadd.f32 %v252, %v253
    %v255 = vrcp.pop %v247
    %v256 = vrcp.pop %v254
    %v257 = vmul.f32 %v238, %v255
    %v258 = vmul.f32 %v240, %v256
    %v260 = vsel %vm220, %v257, 0
    %262 = vmatprep.subr.mxu0 0.0
    %263 = vmatpush1.msra.mxu0 0.0
    %264 = vmatprep.subr.mxu0 0.0
    %265 = vmatpush1.msra.mxu0 0.0
    %266 = vmatprep.subr.mxu0 0.0
    %267 = vmatpush1.msra.mxu0 0.0
    %268 = vmatprep.subr.mxu0 0.0
    %269 = vmatpush1.msra.mxu0 0.0
    %270 = vmatprep.subr.mxu0 0.0
    %271 = vmatpush1.msra.mxu0 0.0
    %272 = vmatprep.subr.mxu0 0.0
    %273 = vmatpush1.msra.mxu0 0.0
    %274 = vmatprep.subr.mxu0 0.0
    %275 = vmatpush1.msra.mxu0 0.0
    %276 = vmatprep.subr.mxu0 0.0
    %277 = vmatpush1.msra.mxu0 0.0
    %278 = vmatprep.subr.mxu0 0.0
    %279 = vmatpush1.msra.mxu0 0.0
    %280 = vmatprep.subr.mxu0 0.0
    %281 = vmatpush1.msra.mxu0 0.0
    %282 = vmatprep.subr.mxu0 0.0
    %283 = vmatpush1.msra.mxu0 0.0
    %284 = vmatprep.subr.mxu0 0.0
    %285 = vmatpush1.msra.mxu0 0.0
    %286 = vmatprep.subr.mxu0 0.0
    %287 = vmatpush1.msra.mxu0 0.0
    %288 = vmatprep.subr.mxu0 0.0
    %289 = vmatpush1.msra.mxu0 0.0
    %290 = vmatprep.subr.mxu0 0.0
    %291 = vmatpush1.msra.mxu0 0.0
    %292 = vmatprep.subr.mxu0 0.0
    %293 = vmatpush1.msra.mxu0 %v63
    %294 = vmatprep.subr.mxu0 0.0
    %295 = vmatpush2.msra.mxu0 0.0
    %296 = vmatprep.subr.mxu0 0.0
    %297 = vmatpush2.msra.mxu0 0.0
    %298 = vmatprep.subr.mxu0 0.0
    %299 = vmatpush2.msra.mxu0 0.0
    %300 = vmatprep.subr.mxu0 0.0
    %301 = vmatpush2.msra.mxu0 0.0
    %302 = vmatprep.subr.mxu0 0.0
    %303 = vmatpush2.msra.mxu0 0.0
    %304 = vmatprep.subr.mxu0 0.0
    %305 = vmatpush2.msra.mxu0 0.0
    %306 = vmatprep.subr.mxu0 0.0
    %307 = vmatpush2.msra.mxu0 0.0
    %308 = vmatprep.subr.mxu0 0.0
    %309 = vmatpush2.msra.mxu0 0.0
    %310 = vmatprep.subr.mxu0 0.0
    %311 = vmatpush2.msra.mxu0 0.0
    %312 = vmatprep.subr.mxu0 0.0
    %313 = vmatpush2.msra.mxu0 0.0
    %314 = vmatprep.subr.mxu0 0.0
    %315 = vmatpush2.msra.mxu0 0.0
    %316 = vmatprep.subr.mxu0 0.0
    %317 = vmatpush2.msra.mxu0 0.0
    %318 = vmatprep.subr.mxu0 0.0
    %319 = vmatpush2.msra.mxu0 0.0
    %320 = vmatprep.subr.mxu0 0.0
    %321 = vmatpush2.msra.mxu0 0.0
    %322 = vmatprep.subr.mxu0 0.0
    %323 = vmatpush2.msra.mxu0 0.0
    %324 = vmatprep.subr.mxu0 0.0
    %325 = vmatpush2.msra.mxu0 0.0
    %326 = vmatprep.mubr.f32.mxu0 0.0
    %327 = vmatmul.mubr.f32.gmra.mxu0 %v260
    %v328 = vpop.f32.mrf.mxu0
    %v329 = vadd.f32 0.0, %v328
    %v330 = vpop.f32.mrf.mxu0
    %331 = vdwg.mxu0
    %v333 = vsel %vm220, %v258, 0
    %335 = vmatprep.subr.mxu0 0.0
    %336 = vmatpush1.msra.mxu0 0.0
    %337 = vmatprep.subr.mxu0 0.0
    %338 = vmatpush1.msra.mxu0 0.0
    %339 = vmatprep.subr.mxu0 0.0
    %340 = vmatpush1.msra.mxu0 0.0
    %341 = vmatprep.subr.mxu0 0.0
    %342 = vmatpush1.msra.mxu0 0.0
    %343 = vmatprep.subr.mxu0 0.0
    %344 = vmatpush1.msra.mxu0 0.0
    %345 = vmatprep.subr.mxu0 0.0
    %346 = vmatpush1.msra.mxu0 0.0
    %347 = vmatprep.subr.mxu0 0.0
    %348 = vmatpush1.msra.mxu0 0.0
    %349 = vmatprep.subr.mxu0 0.0
    %350 = vmatpush1.msra.mxu0 0.0
    %351 = vmatprep.subr.mxu0 0.0
    %352 = vmatpush1.msra.mxu0 0.0
    %353 = vmatprep.subr.mxu0 0.0
    %354 = vmatpush1.msra.mxu0 0.0
    %355 = vmatprep.subr.mxu0 0.0
    %356 = vmatpush1.msra.mxu0 0.0
    %357 = vmatprep.subr.mxu0 0.0
    %358 = vmatpush1.msra.mxu0 0.0
    %359 = vmatprep.subr.mxu0 0.0
    %360 = vmatpush1.msra.mxu0 0.0
    %361 = vmatprep.subr.mxu0 0.0
    %362 = vmatpush1.msra.mxu0 0.0
    %363 = vmatprep.subr.mxu0 0.0
    %364 = vmatpush1.msra.mxu0 0.0
    %365 = vmatprep.subr.mxu0 0.0
    %366 = vmatpush1.msra.mxu0 %v64
    %367 = vmatprep.subr.mxu0 0.0
    %368 = vmatpush2.msra.mxu0 0.0
    %369 = vmatprep.subr.mxu0 0.0
    %370 = vmatpush2.msra.mxu0 0.0
    %371 = vmatprep.subr.mxu0 0.0
    %372 = vmatpush2.msra.mxu0 0.0
    %373 = vmatprep.subr.mxu0 0.0
    %374 = vmatpush2.msra.mxu0 0.0
    %375 = vmatprep.subr.mxu0 0.0
    %376 = vmatpush2.msra.mxu0 0.0
    %377 = vmatprep.subr.mxu0 0.0
    %378 = vmatpush2.msra.mxu0 0.0
    %379 = vmatprep.subr.mxu0 0.0
    %380 = vmatpush2.msra.mxu0 0.0
    %381 = vmatprep.subr.mxu0 0.0
    %382 = vmatpush2.msra.mxu0 0.0
    %383 = vmatprep.subr.mxu0 0.0
    %384 = vmatpush2.msra.mxu0 0.0
    %385 = vmatprep.subr.mxu0 0.0
    %386 = vmatpush2.msra.mxu0 0.0
    %387 = vmatprep.subr.mxu0 0.0
    %388 = vmatpush2.msra.mxu0 0.0
    %389 = vmatprep.subr.mxu0 0.0
    %390 = vmatpush2.msra.mxu0 0.0
    %391 = vmatprep.subr.mxu0 0.0
    %392 = vmatpush2.msra.mxu0 0.0
    %393 = vmatprep.subr.mxu0 0.0
    %394 = vmatpush2.msra.mxu0 0.0
    %395 = vmatprep.subr.mxu0 0.0
    %396 = vmatpush2.msra.mxu0 0.0
    %397 = vmatprep.subr.mxu0 0.0
    %398 = vmatpush2.msra.mxu0 0.0
    %399 = vmatprep.mubr.f32.mxu0 0.0
    %400 = vmatmul.mubr.f32.gmra.mxu0 %v333
    %v401 = vpop.f32.mrf.mxu0
    %v402 = vadd.f32 0.0, %v401
    %v403 = vpop.f32.mrf.mxu0
    %404 = vdwg.mxu0
    %405 = vst.msk [vmem:[#allocation8] sm:$0xff] %vm220, %v257
    %406 = vrot.lane.b32.xlu0 %v258, 8
    %v407 = vpop.permute.xlu0 %406
    %vm409 = vcmask 130112
    %410 = vst.msk [vmem:[#allocation8] sm:$0xff] %vm409, %v407
    %411 = vst.msk [vmem:[#allocation9] sm:$0xff] %vm65, %v329
    %413 = vrot.lane.b32.xlu0 %v402, 32
    %v414 = vpop.permute.xlu0 %413
    %vm416 = vcmask 523520
    %417 = vst.msk [vmem:[#allocation9] sm:$0xff] %vm416, %v414
    // Predicated region
    $region26: #{tpu_custom_call.1} parent=1 // pred_check
      _
    $region27: #{tpu_custom_call.1} parent=1 // pred_check_branch
      %419 = sbr.rel (0) target = $region29
    $region28: #{tpu_custom_call.1} parent=1 // pred_region
      %s421 = ssub.s32 128, 128
      %422 = vsyncadd [#allocation4], %s421
      %s424 = sshll.u32 [#allocation8], 4
      %s425 = int_to_ptr.vmem [resolvable:$true] %s424
      %427 = dma.vmem_to_hbm [thread:$0]  %s425, 128, %s3, [#allocation4]
    $region29: #{tpu_custom_call.1} parent=1 // pred_fallthru
      _
    // Predicated region
    $region30: #{tpu_custom_call.1} parent=1 // pred_check
      _
    $region31: #{tpu_custom_call.1} parent=1 // pred_check_branch
      %429 = sbr.rel (0) target = $region33
    $region32: #{tpu_custom_call.1} parent=1 // pred_region
      %s431 = ssub.s32 128, 128
      %432 = vsyncadd [#allocation10], %s431
      %s434 = sshll.u32 [#allocation9], 4
      %s435 = int_to_ptr.vmem [resolvable:$true] %s434
      %437 = dma.vmem_to_hbm [thread:$0]  %s435, 128, %s4, [#allocation10]
    $region33: #{tpu_custom_call.1} parent=1 // pred_fallthru
      _
    // Predicated region
    $region34: #{tpu_custom_call.1} parent=1 // pred_check
      _
    $region35: #{tpu_custom_call.1} parent=1 // pred_check_branch
      %439 = sbr.rel (0) target = $region37
    $region36: #{tpu_custom_call.1} parent=1 // pred_region
      %440 = dma.done [#allocation4], 128
    $region37: #{tpu_custom_call.1} parent=1 // pred_fallthru
      _
    // Predicated region
    $region38: #{tpu_custom_call.1} parent=1 // pred_check
      _
    $region39: #{tpu_custom_call.1} parent=1 // pred_check_branch
      %442 = sbr.rel (0) target = $region41
    $region40: #{tpu_custom_call.1} parent=1 // pred_region
      %443 = dma.done [#allocation10], 128
    $region41: #{tpu_custom_call.1} parent=1 // pred_fallthru
      _
    %444 = vsyncpa [#allocation3], 1
    %445 = vsyncpa [#allocation6], 1
    %446 = vsyncpa [#allocation4], 1
    %447 = vsyncpa [#allocation10], 1

</llo_original>
